<compile_context>
chip_gen: v6e
topology: v6e:2x2x1
jax: 0.10.0
libtpu: 0.0.40
codegen_flags: <defaults>
</compile_context>

<pallas_src>
import jax
import jax.numpy as jnp
from jax.experimental import pallas as pl
from jax.experimental.pallas import tpu as pltpu

HIDDEN = 128
LANE = 128
SUBLANE = 8


def _cdiv(a, b):
    return (a + b - 1) // b


def _round_up(x, m):
    return ((x + m - 1) // m) * m


def dqn_kernel(x_ref, w1_ref, w234_ref, b123_ref, b4_ref, out_ref):
    H = HIDDEN
    # Layer 1: MXU bf16 x bf16 -> f32, then bf16 bias-add + tanh (VPU/EUP).
    h = jnp.dot(x_ref[...], w1_ref[...], preferred_element_type=jnp.float32)
    h = jnp.tanh(h.astype(jnp.bfloat16) + b123_ref[:, 0:H])
    # Layer 2
    h = jnp.dot(h, w234_ref[:, 0:H], preferred_element_type=jnp.float32)
    h = jnp.tanh(h.astype(jnp.bfloat16) + b123_ref[:, H:2 * H])
    # Layer 3
    h = jnp.dot(h, w234_ref[:, H:2 * H], preferred_element_type=jnp.float32)
    h = jnp.tanh(h.astype(jnp.bfloat16) + b123_ref[:, 2 * H:3 * H])
    # Layer 4: f32 epilogue, lane-dense bf16 store (actions padded to 128 lanes).
    y = jnp.dot(h, w234_ref[:, 2 * H:3 * H],
                preferred_element_type=jnp.float32) + b4_ref[...]
    out_ref[...] = y.astype(out_ref.dtype)


def _choose_tb(B, tb_max):
    """Pick a batch tile: multiple of 8 sublanes, <= tb_max, >=2 balanced grid
    steps when the batch allows it (v7x megacore), minimal padded-row slack."""
    B = max(int(B), 1)
    if B <= SUBLANE:
        return SUBLANE
    n_tiles = max(2, _cdiv(B, tb_max))
    return _round_up(_cdiv(B, n_tiles), SUBLANE)


def dqn_forward(x, params, n_actions, *, tb=None, tb_max=256):
    """x: [B, n_observations] float32. params: output of prepare_params.
    Returns [B, n_actions] float32."""
    B, n_obs = x.shape
    n_obs_pad = params["w1"].shape[0]     # n_observations rounded up to 128 lanes
    out_pad = params["b4"].shape[1]       # n_actions rounded up to 128 lanes

    # Lane-dense input tile: zero-pad observation columns, cast to bf16
    # (the kernel math is bf16 on the MXU anyway; halves input DMA bytes).
    if n_obs_pad != n_obs:
        x = jnp.pad(x, ((0, 0), (0, n_obs_pad - n_obs)))
    x = x.astype(jnp.bfloat16)

    # Batch tiling.
    if tb is None:
        tb = _choose_tb(B, tb_max)
    tb = max(SUBLANE, _round_up(min(tb, _round_up(B, SUBLANE)), SUBLANE))
    b_pad = _round_up(B, tb)
    if b_pad != B:
        x = jnp.pad(x, ((0, b_pad - B), (0, 0)))
    grid = (b_pad // tb,)

    operands = (x, params["w1"], params["w234"], params["b123"], params["b4"])

    # x / out: tiled along the batch grid axis.
    # Weights / biases: constant block index -> fetched once, VMEM-resident.
    in_specs = [
        pl.BlockSpec((tb, n_obs_pad), lambda i: (i, 0)),
        pl.BlockSpec(params["w1"].shape, lambda i: (0, 0)),
        pl.BlockSpec(params["w234"].shape, lambda i: (0, 0)),
        pl.BlockSpec(params["b123"].shape, lambda i: (0, 0)),
        pl.BlockSpec(params["b4"].shape, lambda i: (0, 0)),
    ]
    out_spec = pl.BlockSpec((tb, out_pad), lambda i: (i, 0))

    out = pl.pallas_call(
        dqn_kernel,
        grid=grid,
        in_specs=in_specs,
        out_specs=out_spec,
        out_shape=jax.ShapeDtypeStruct((b_pad, out_pad), jnp.bfloat16),
        compiler_params=pltpu.CompilerParams(
            dimension_semantics=("parallel",)),  # v7x: shard batch over 2 TCs
    )(*operands)
    return out[:B, :n_actions].astype(jnp.float32)


def init_params(key, n_observations, n_actions):
    """Deterministic f32 master init mimicking nn.Linear default (U[+/-1/sqrt(fan_in)])."""
    dims = [(n_observations, HIDDEN), (HIDDEN, HIDDEN),
            (HIDDEN, HIDDEN), (HIDDEN, n_actions)]
    params = {}
    for i, (fan_in, fan_out) in enumerate(dims, start=1):
        key, kw, kb = jax.random.split(key, 3)
        bound = 1.0 / (fan_in ** 0.5)
        params[f"w{i}"] = jax.random.uniform(
            kw, (fan_in, fan_out), jnp.float32, minval=-bound, maxval=bound)
        params[f"b{i}"] = jax.random.uniform(
            kb, (1, fan_out), jnp.float32, minval=-bound, maxval=bound)
    return params


def prepare_params(params_f32, n_observations, n_actions):
    """Pack / pad parameters for the kernel:
      w1   : [n_obs_pad, 128]  bf16 (input rows zero-padded to 128 lanes)
      w234 : [128, 384]        bf16 (w2 | w3 | w4-padded-to-128 output lanes)
      b123 : [1, 384]          bf16 (b1 | b2 | b3)  -- bf16 epilogue layers
      b4   : [1, 128]          f32  (padded)        -- f32 epilogue final layer
    """
    n_obs_pad = _round_up(max(n_observations, 1), LANE)
    out_pad = _round_up(max(n_actions, 1), LANE)

    w1 = jnp.pad(params_f32["w1"].astype(jnp.bfloat16),
                 ((0, n_obs_pad - n_observations), (0, 0)))
    w4 = jnp.pad(params_f32["w4"].astype(jnp.bfloat16),
                 ((0, 0), (0, out_pad - n_actions)))
    w234 = jnp.concatenate(
        [params_f32["w2"].astype(jnp.bfloat16),
         params_f32["w3"].astype(jnp.bfloat16),
         w4], axis=1)
    b123 = jnp.concatenate(
        [params_f32["b1"], params_f32["b2"], params_f32["b3"]],
        axis=1).astype(jnp.bfloat16)
    b4 = jnp.pad(params_f32["b4"], ((0, 0), (0, out_pad - n_actions)))
    return {"w1": w1, "w234": w234, "b123": b123, "b4": b4}


def reference_forward_mixed(x, prepared, n_observations, n_actions):
    """Same mixed-precision math as the kernel, in plain JAX."""
    H = HIDDEN
    n_obs_pad = prepared["w1"].shape[0]
    xb = jnp.pad(x, ((0, 0), (0, n_obs_pad - n_observations))).astype(jnp.bfloat16)
    w234, b123 = prepared["w234"], prepared["b123"]

    h = jnp.dot(xb, prepared["w1"], preferred_element_type=jnp.float32)
    h = jnp.tanh(h.astype(jnp.bfloat16) + b123[:, 0:H])
    h = jnp.dot(h, w234[:, 0:H], preferred_element_type=jnp.float32)
    h = jnp.tanh(h.astype(jnp.bfloat16) + b123[:, H:2 * H])
    h = jnp.dot(h, w234[:, H:2 * H], preferred_element_type=jnp.float32)
    h = jnp.tanh(h.astype(jnp.bfloat16) + b123[:, 2 * H:3 * H])
    y = jnp.dot(h, w234[:, 2 * H:3 * H],
                preferred_element_type=jnp.float32) + prepared["b4"]
    return y.astype(jnp.bfloat16).astype(jnp.float32)[:, :n_actions]


def reference_forward_f32(x, params_f32):
    h = jnp.tanh(x @ params_f32["w1"] + params_f32["b1"])
    h = jnp.tanh(h @ params_f32["w2"] + params_f32["b2"])
    h = jnp.tanh(h @ params_f32["w3"] + params_f32["b3"])
    return h @ params_f32["w4"] + params_f32["b4"]


if __name__ == "__main__":
    # SweeperEnv with 'discrete-5' actions and 20 radars + a few state scalars.
    n_observations = 24
    n_actions = 5
    batch = 64  # auto tile -> tb=32, grid=(2,): exercises the batch grid

    key = jax.random.PRNGKey(0)
    key, kx = jax.random.split(key)
    x = jax.random.normal(kx, (batch, n_observations), jnp.float32)

    master = init_params(key, n_observations, n_actions)
    params = prepare_params(master, n_observations, n_actions)

    out = dqn_forward(x, params, n_actions)
    out = jax.block_until_ready(out)

    ref_mixed = reference_forward_mixed(x, params, n_observations, n_actions)
    ref_f32 = reference_forward_f32(x, master)

    assert out.shape == (batch, n_actions)
    assert jnp.allclose(out, ref_mixed, atol=2e-2, rtol=2e-2), \
        "mismatch vs mixed-precision reference"
    assert jnp.allclose(out, ref_f32, atol=7.5e-2, rtol=7.5e-2), \
        "mismatch vs f32 reference (bf16 quantization sanity check)"

    print("KERNEL_OK")
</pallas_src>

<mosaic_0001>
module attributes {stable_mosaic.version = 11 : i64} {
  func.func @dqn_kernel(%arg0: i32, %arg1: memref<32x128xbf16, #tpu.memory_space<vmem>>, %arg2: memref<128x128xbf16, #tpu.memory_space<vmem>>, %arg3: memref<128x384xbf16, #tpu.memory_space<vmem>>, %arg4: memref<1x384xbf16, #tpu.memory_space<vmem>>, %arg5: memref<1x128xf32, #tpu.memory_space<vmem>>, %arg6: memref<32x128xbf16, #tpu.memory_space<vmem>>) attributes {dimension_semantics = [#tpu.dimension_semantics<parallel>], iteration_bounds = array<i64: 2>, scalar_prefetch = 0 : i64, scratch_operands = 0 : i64, tpu.core_type = #tpu.core_type<tc>, window_params = [{transform_indices = @transform_0, window_bounds = array<i64: 32, 128>}, {pipeline_mode = #tpu.pipeline_mode<synchronous>, transform_indices = @transform_1, window_bounds = array<i64: 128, 128>}, {pipeline_mode = #tpu.pipeline_mode<synchronous>, transform_indices = @transform_2, window_bounds = array<i64: 128, 384>}, {pipeline_mode = #tpu.pipeline_mode<synchronous>, transform_indices = @transform_3, window_bounds = array<i64: 1, 384>}, {pipeline_mode = #tpu.pipeline_mode<synchronous>, transform_indices = @transform_4, window_bounds = array<i64: 1, 128>}, {transform_indices = @transform_5, window_bounds = array<i64: 32, 128>}]} {
    %c0 = arith.constant 0 : index
    %c0_0 = arith.constant 0 : index
    %0 = vector.load %arg1[%c0, %c0_0] : memref<32x128xbf16, #tpu.memory_space<vmem>>, vector<32x128xbf16>
    %c0_1 = arith.constant 0 : index
    %c0_2 = arith.constant 0 : index
    %1 = vector.load %arg2[%c0_1, %c0_2] : memref<128x128xbf16, #tpu.memory_space<vmem>>, vector<128x128xbf16>
    %cst = arith.constant dense<0.000000e+00> : vector<32x128xf32>
    %2 = tpu.matmul %0, %1, %cst {dimension_numbers = #tpu.dot_dimension_numbers<[1], [0], [0], [1], [0, 0, 1, 1], [], []>} : vector<32x128xbf16>, vector<128x128xbf16>, vector<32x128xf32> -> vector<32x128xf32>
    %3 = arith.truncf %2 : vector<32x128xf32> to vector<32x128xbf16>
    %c0_3 = arith.constant 0 : index
    %c0_4 = arith.constant 0 : index
    %4 = vector.load %arg4[%c0_3, %c0_4] : memref<1x384xbf16, #tpu.memory_space<vmem>>, vector<1x128xbf16>
    %5 = vector.broadcast %4 : vector<1x128xbf16> to vector<32x128xbf16>
    %6 = arith.addf %3, %5 : vector<32x128xbf16>
    %7 = math.tanh %6 : vector<32x128xbf16>
    %c0_5 = arith.constant 0 : index
    %c0_6 = arith.constant 0 : index
    %8 = vector.load %arg3[%c0_5, %c0_6] : memref<128x384xbf16, #tpu.memory_space<vmem>>, vector<128x128xbf16>
    %cst_7 = arith.constant dense<0.000000e+00> : vector<32x128xf32>
    %9 = tpu.matmul %7, %8, %cst_7 {dimension_numbers = #tpu.dot_dimension_numbers<[1], [0], [0], [1], [0, 0, 1, 1], [], []>} : vector<32x128xbf16>, vector<128x128xbf16>, vector<32x128xf32> -> vector<32x128xf32>
    %10 = arith.truncf %9 : vector<32x128xf32> to vector<32x128xbf16>
    %c0_8 = arith.constant 0 : index
    %c128 = arith.constant 128 : index
    %11 = vector.load %arg4[%c0_8, %c128] : memref<1x384xbf16, #tpu.memory_space<vmem>>, vector<1x128xbf16>
    %12 = vector.broadcast %11 : vector<1x128xbf16> to vector<32x128xbf16>
    %13 = arith.addf %10, %12 : vector<32x128xbf16>
    %14 = math.tanh %13 : vector<32x128xbf16>
    %c0_9 = arith.constant 0 : index
    %c128_10 = arith.constant 128 : index
    %15 = vector.load %arg3[%c0_9, %c128_10] : memref<128x384xbf16, #tpu.memory_space<vmem>>, vector<128x128xbf16>
    %cst_11 = arith.constant dense<0.000000e+00> : vector<32x128xf32>
    %16 = tpu.matmul %14, %15, %cst_11 {dimension_numbers = #tpu.dot_dimension_numbers<[1], [0], [0], [1], [0, 0, 1, 1], [], []>} : vector<32x128xbf16>, vector<128x128xbf16>, vector<32x128xf32> -> vector<32x128xf32>
    %17 = arith.truncf %16 : vector<32x128xf32> to vector<32x128xbf16>
    %c0_12 = arith.constant 0 : index
    %c256 = arith.constant 256 : index
    %18 = vector.load %arg4[%c0_12, %c256] : memref<1x384xbf16, #tpu.memory_space<vmem>>, vector<1x128xbf16>
    %19 = vector.broadcast %18 : vector<1x128xbf16> to vector<32x128xbf16>
    %20 = arith.addf %17, %19 : vector<32x128xbf16>
    %21 = math.tanh %20 : vector<32x128xbf16>
    %c0_13 = arith.constant 0 : index
    %c256_14 = arith.constant 256 : index
    %22 = vector.load %arg3[%c0_13, %c256_14] : memref<128x384xbf16, #tpu.memory_space<vmem>>, vector<128x128xbf16>
    %cst_15 = arith.constant dense<0.000000e+00> : vector<32x128xf32>
    %23 = tpu.matmul %21, %22, %cst_15 {dimension_numbers = #tpu.dot_dimension_numbers<[1], [0], [0], [1], [0, 0, 1, 1], [], []>} : vector<32x128xbf16>, vector<128x128xbf16>, vector<32x128xf32> -> vector<32x128xf32>
    %c0_16 = arith.constant 0 : index
    %c0_17 = arith.constant 0 : index
    %24 = vector.load %arg5[%c0_16, %c0_17] : memref<1x128xf32, #tpu.memory_space<vmem>>, vector<1x128xf32>
    %25 = vector.broadcast %24 : vector<1x128xf32> to vector<32x128xf32>
    %26 = arith.addf %23, %25 : vector<32x128xf32>
    %27 = arith.truncf %26 : vector<32x128xf32> to vector<32x128xbf16>
    %c0_18 = arith.constant 0 : index
    %c0_19 = arith.constant 0 : index
    %28 = vector.load %arg6[%c0_18, %c0_19] : memref<32x128xbf16, #tpu.memory_space<vmem>>, vector<32x128xbf16>
    tpu.vector_store %arg6[%c0_18, %c0_19], %27 {strides = array<i32>} : memref<32x128xbf16, #tpu.memory_space<vmem>>, vector<32x128xbf16>,
    return
  }
  func.func @transform_0(%arg0: i32) -> (i32, i32) {
    %c0_i32 = arith.constant 0 : i32
    %c0_i32_0 = arith.constant 0 : i32
    return %arg0, %c0_i32 : i32, i32
  }
  func.func @transform_1(%arg0: i32) -> (i32, i32) {
    %c0_i32 = arith.constant 0 : i32
    %c0_i32_0 = arith.constant 0 : i32
    %c0_i32_1 = arith.constant 0 : i32
    return %c0_i32, %c0_i32_0 : i32, i32
  }
  func.func @transform_2(%arg0: i32) -> (i32, i32) {
    %c0_i32 = arith.constant 0 : i32
    %c0_i32_0 = arith.constant 0 : i32
    %c0_i32_1 = arith.constant 0 : i32
    return %c0_i32, %c0_i32_0 : i32, i32
  }
  func.func @transform_3(%arg0: i32) -> (i32, i32) {
    %c0_i32 = arith.constant 0 : i32
    %c0_i32_0 = arith.constant 0 : i32
    %c0_i32_1 = arith.constant 0 : i32
    return %c0_i32, %c0_i32_0 : i32, i32
  }
  func.func @transform_4(%arg0: i32) -> (i32, i32) {
    %c0_i32 = arith.constant 0 : i32
    %c0_i32_0 = arith.constant 0 : i32
    %c0_i32_1 = arith.constant 0 : i32
    return %c0_i32, %c0_i32_0 : i32, i32
  }
  func.func @transform_5(%arg0: i32) -> (i32, i32) {
    %c0_i32 = arith.constant 0 : i32
    %c0_i32_0 = arith.constant 0 : i32
    return %arg0, %c0_i32 : i32, i32
  }
}

</mosaic_0001>

<llo_original>
// kernel: tpu_custom_call.1
$region0: #{tpu_custom_call.1}
  #allocation0 [shape = 'u32[]', space=smem, size = 0x4, offset = 0x4, fixed_abs, tag = 'smem constant byte address 0x4 - core index']
  #allocation1 [shape = 'u32[144,128]{1,0:T(1,128)}', space=vmem, size = 0x12000, scoped, tag = 'internal scratch']
  %s0 = inlined_call_operand.hbm [shape: bf16[64,128], index: 0, kind: input, shape index: {}]
  %s1 = inlined_call_operand.hbm [shape: bf16[128,128], index: 1, kind: input, shape index: {}]
  %s2 = inlined_call_operand.hbm [shape: bf16[128,384], index: 2, kind: input, shape index: {}]
  %s3 = inlined_call_operand.vmem [shape: bf16[1,384], index: 3, kind: input, shape index: {}]
  %s4 = inlined_call_operand.vmem [shape: f32[1,128], index: 4, kind: input, shape index: {}]
  %s5 = inlined_call_operand.hbm [shape: bf16[64,128], index: 5, kind: output, shape index: {}]
  %s6 = sld [smem:[#allocation0]]
  $region65: #{tpu_custom_call.1} parent=0
    _
  %s8 = ssub.s32 1, %s6
  %s9 = scalar_select 0, %s8, %s6
  $region1: #{tpu_custom_call.1} parent=0
    #allocation2 [shape = 'u8[16384]{0}', space=vmem, size = 0x4000, scoped, tag = 'input window, operand 0']
    #allocation3 [shape = 's32[2]{0}', space=sflag, size = 0x8, scoped, tag = 'scoped memory for tpu_custom_call.1']
    #allocation4 [shape = 's32[2]{0}', space=sflag, size = 0x8, scoped, tag = 'scoped memory for tpu_custom_call.1']
    #allocation5 [shape = 'u8[32768]{0}', space=vmem, size = 0x8000, scoped, tag = 'input window, operand 1, single buffered']
    #allocation6 [shape = 's32[1]{0}', space=sflag, size = 0x4, scoped, tag = 'scoped memory for tpu_custom_call.1']
    #allocation7 [shape = 'u8[98304]{0}', space=vmem, size = 0x18000, scoped, tag = 'input window, operand 2, single buffered']
    #allocation8 [shape = 'u8[16384]{0}', space=vmem, size = 0x4000, scoped, tag = 'output window, operand 0']
    %10 = vsyncpa [#allocation3], 0
    %s11 = scalar_lea.sflag [#allocation3], 1
    %12 = vsyncpa %s11, 0
    %13 = vsyncpa [#allocation6], 0
    %14 = vsyncpa [#allocation4], 0
    %s15 = scalar_lea.sflag [#allocation4], 1
    %16 = vsyncpa %s15, 0
    loop: start=0, step=1, limit=4
    $region2: #{tpu_custom_call.1} parent=1 // loop_pre_header
      _
    $region3: #{tpu_custom_call.1} parent=1 // loop_header
      %s18 = sphi 0, %s22
      %p19 = scmp.ge.s32.totalorder %s18, 4
      %s28 = sphi 0, %s30
      %s31 = sphi 0, %s28
      %s32 = sphi 0, %s31
      %s48 = sphi 0, %s32
      %s52 = sphi 0, %s52
      %s54 = sphi 0, %s52
      %s55 = sphi 0, %s54
      %s69 = sphi 0, %s55
      %s73 = sphi 0, %s73
      %s75 = sphi 0, %s73
      %s76 = sphi 0, %s75
      %s90 = sphi 0, %s76
      %s94 = sphi 0, %s94
      %s96 = sphi 0, %s94
      %s97 = sphi 0, %s96
      %s111 = sphi 0, %s97
      %s115 = sphi 0, %s115
      %s117 = sphi 0, %s115
      %s118 = sphi 0, %s117
      %s132 = sphi 0, %s118
      %s138 = sphi 0, %s140
      %s141 = sphi 0, %s138
      %s142 = sphi 0, %s141
      %s158 = sphi 0, %s142
    $region4: #{tpu_custom_call.1} parent=1 // loop_header_branch
      %21 = sbr.rel (%p19) target = $region8
    $region5: #{tpu_custom_call.1} parent=1 // loop_body
      %s23 = ssub.s32 %s18, 1
      %s24 = ssub.s32 %s18, 2
      %s25 = sadd.s32 %s18, 1
      %s26 = ssub.s32 %s18, %s25
      %p27 = scmp.eq.s32.totalorder %s26, 0
      %s29 = sadd.s32 %s28, 1
      %s30 = scalar_select %p27, %s28, %s29
      %p33 = pneg %p27
      %p34 = scmp.eq.s32.totalorder %s18, 1
      %p35 = por %p33, %p34
      %p36 = scmp.ne.s32.totalorder %s28, %s31
      %p37 = scmp.eq.s32.totalorder %s18, 0
      %p38 = por %p36, %p37
      %p39 = scmp.ne.s32.totalorder %s28, %s31
      %p40 = scmp.eq.s32.totalorder %s23, 1
      %p41 = por %p39, %p40
      %p42 = scmp.ne.s32.totalorder %s31, %s32
      %p43 = scmp.eq.s32.totalorder %s23, 0
      %p44 = por %p42, %p43
      %p45 = scmp.ne.s32.totalorder %s31, %s32
      %p46 = scmp.eq.s32.totalorder %s24, 1
      %p47 = por %p45, %p46
      %p49 = scmp.ne.s32.totalorder %s32, %s48
      %p50 = scmp.eq.s32.totalorder %s24, 0
      %p51 = por %p49, %p50
      %s53 = sadd.s32 %s52, 1
      %p56 = scmp.eq.s32.totalorder %s18, 1
      %p57 = scmp.ne.s32.totalorder %s52, %s54
      %p58 = scmp.eq.s32.totalorder %s18, 0
      %p59 = por %p57, %p58
      %p60 = scmp.ne.s32.totalorder %s52, %s54
      %p61 = scmp.eq.s32.totalorder %s23, 1
      %p62 = por %p60, %p61
      %p63 = scmp.ne.s32.totalorder %s54, %s55
      %p64 = scmp.eq.s32.totalorder %s23, 0
      %p65 = por %p63, %p64
      %p66 = scmp.ne.s32.totalorder %s54, %s55
      %p67 = scmp.eq.s32.totalorder %s24, 1
      %p68 = por %p66, %p67
      %p70 = scmp.ne.s32.totalorder %s55, %s69
      %p71 = scmp.eq.s32.totalorder %s24, 0
      %p72 = por %p70, %p71
      %s74 = sadd.s32 %s73, 1
      %p77 = scmp.eq.s32.totalorder %s18, 1
      %p78 = scmp.ne.s32.totalorder %s73, %s75
      %p79 = scmp.eq.s32.totalorder %s18, 0
      %p80 = por %p78, %p79
      %p81 = scmp.ne.s32.totalorder %s73, %s75
      %p82 = scmp.eq.s32.totalorder %s23, 1
      %p83 = por %p81, %p82
      %p84 = scmp.ne.s32.totalorder %s75, %s76
      %p85 = scmp.eq.s32.totalorder %s23, 0
      %p86 = por %p84, %p85
      %p87 = scmp.ne.s32.totalorder %s75, %s76
      %p88 = scmp.eq.s32.totalorder %s24, 1
      %p89 = por %p87, %p88
      %p91 = scmp.ne.s32.totalorder %s76, %s90
      %p92 = scmp.eq.s32.totalorder %s24, 0
      %p93 = por %p91, %p92
      %s95 = sadd.s32 %s94, 1
      %p98 = scmp.eq.s32.totalorder %s18, 1
      %p99 = scmp.ne.s32.totalorder %s94, %s96
      %p100 = scmp.eq.s32.totalorder %s18, 0
      %p101 = por %p99, %p100
      %p102 = scmp.ne.s32.totalorder %s94, %s96
      %p103 = scmp.eq.s32.totalorder %s23, 1
      %p104 = por %p102, %p103
      %p105 = scmp.ne.s32.totalorder %s96, %s97
      %p106 = scmp.eq.s32.totalorder %s23, 0
      %p107 = por %p105, %p106
      %p108 = scmp.ne.s32.totalorder %s96, %s97
      %p109 = scmp.eq.s32.totalorder %s24, 1
      %p110 = por %p108, %p109
      %p112 = scmp.ne.s32.totalorder %s97, %s111
      %p113 = scmp.eq.s32.totalorder %s24, 0
      %p114 = por %p112, %p113
      %s116 = sadd.s32 %s115, 1
      %p119 = scmp.eq.s32.totalorder %s18, 1
      %p120 = scmp.ne.s32.totalorder %s115, %s117
      %p121 = scmp.eq.s32.totalorder %s18, 0
      %p122 = por %p120, %p121
      %p123 = scmp.ne.s32.totalorder %s115, %s117
      %p124 = scmp.eq.s32.totalorder %s23, 1
      %p125 = por %p123, %p124
      %p126 = scmp.ne.s32.totalorder %s117, %s118
      %p127 = scmp.eq.s32.totalorder %s23, 0
      %p128 = por %p126, %p127
      %p129 = scmp.ne.s32.totalorder %s117, %s118
      %p130 = scmp.eq.s32.totalorder %s24, 1
      %p131 = por %p129, %p130
      %p133 = scmp.ne.s32.totalorder %s118, %s132
      %p134 = scmp.eq.s32.totalorder %s24, 0
      %p135 = por %p133, %p134
      %s136 = ssub.s32 %s18, %s25
      %p137 = scmp.eq.s32.totalorder %s136, 0
      %s139 = sadd.s32 %s138, 1
      %s140 = scalar_select %p137, %s138, %s139
      %p143 = pneg %p137
      %p144 = scmp.eq.s32.totalorder %s18, 1
      %p145 = por %p143, %p144
      %p146 = scmp.ne.s32.totalorder %s138, %s141
      %p147 = scmp.eq.s32.totalorder %s18, 0
      %p148 = por %p146, %p147
      %p149 = scmp.ne.s32.totalorder %s138, %s141
      %p150 = scmp.eq.s32.totalorder %s23, 1
      %p151 = por %p149, %p150
      %p152 = scmp.ne.s32.totalorder %s141, %s142
      %p153 = scmp.eq.s32.totalorder %s23, 0
      %p154 = por %p152, %p153
      %p155 = scmp.ne.s32.totalorder %s141, %s142
      %p156 = scmp.eq.s32.totalorder %s24, 1
      %p157 = por %p155, %p156
      %p159 = scmp.ne.s32.totalorder %s142, %s158
      %p160 = scmp.eq.s32.totalorder %s24, 0
      %p161 = por %p159, %p160
      %p162 = scmp.le.s32.totalorder 1, %s18
      %p163 = scmp.lt.s32.totalorder %s18, 3
      %p164 = pnand %p162, %p163
      %p165 = pneg %p164
      // Predicated region
      $region9: #{tpu_custom_call.1} parent=5 // pred_check
        _
      $region10: #{tpu_custom_call.1} parent=5 // pred_check_branch
        %167 = sbr.rel (%p164) target = $region12
      $region11: #{tpu_custom_call.1} parent=5 // pred_region
        %s168 = ssub.s32 %s18, 1
        // Predicated region
        $region13: #{tpu_custom_call.1} parent=11 // pred_check
          %p169 = pneg %p65
        $region14: #{tpu_custom_call.1} parent=11 // pred_check_branch
          %171 = sbr.rel (%p169) target = $region16
        $region15: #{tpu_custom_call.1} parent=11 // pred_region
          %s173 = ssub.s32 1024, 1024
          %174 = vsyncadd [#allocation6], %s173
          %s175 = sshll.u32 [#allocation5], 4
          %s176 = int_to_ptr.vmem [resolvable:$true] %s175
          %181 = dma.hbm_to_vmem [thread:$0]  %s1, 1024, %s176, [#allocation6], 64, 64, 4
        $region16: #{tpu_custom_call.1} parent=11 // pred_fallthru
          _
        // Predicated region
        $region17: #{tpu_custom_call.1} parent=11 // pred_check
          %p182 = pneg %p86
        $region18: #{tpu_custom_call.1} parent=11 // pred_check_branch
          %184 = sbr.rel (%p182) target = $region20
        $region19: #{tpu_custom_call.1} parent=11 // pred_region
          %s186 = ssub.s32 3072, 3072
          %187 = vsyncadd [#allocation6], %s186
          %s188 = sshll.u32 [#allocation7], 4
          %s189 = int_to_ptr.vmem [resolvable:$true] %s188
          %194 = dma.hbm_to_vmem [thread:$0]  %s2, 3072, %s189, [#allocation6], 192, 192, 12
        $region20: #{tpu_custom_call.1} parent=11 // pred_fallthru
          _
        // Predicated region
        $region21: #{tpu_custom_call.1} parent=11 // pred_check
          %p195 = pneg %p107
        $region22: #{tpu_custom_call.1} parent=11 // pred_check_branch
          %197 = sbr.rel (%p195) target = $region24
        $region23: #{tpu_custom_call.1} parent=11 // pred_region
          _
        $region24: #{tpu_custom_call.1} parent=11 // pred_fallthru
          _
        // Predicated region
        $region25: #{tpu_custom_call.1} parent=11 // pred_check
          %p198 = pneg %p128
        $region26: #{tpu_custom_call.1} parent=11 // pred_check_branch
          %200 = sbr.rel (%p198) target = $region28
        $region27: #{tpu_custom_call.1} parent=11 // pred_region
          _
        $region28: #{tpu_custom_call.1} parent=11 // pred_fallthru
          _
      $region12: #{tpu_custom_call.1} parent=5 // pred_fallthru
        _
      %p201 = scmp.lt.s32.totalorder %s18, 2
      // Predicated region
      $region29: #{tpu_custom_call.1} parent=5 // pred_check
        %p202 = pneg %p201
      $region30: #{tpu_custom_call.1} parent=5 // pred_check_branch
        %204 = sbr.rel (%p202) target = $region32
      $region31: #{tpu_custom_call.1} parent=5 // pred_region
        // Predicated region
        $region33: #{tpu_custom_call.1} parent=31 // pred_check
          %p205 = pneg %p38
        $region34: #{tpu_custom_call.1} parent=31 // pred_check_branch
          %207 = sbr.rel (%p205) target = $region36
        $region35: #{tpu_custom_call.1} parent=31 // pred_region
          %s208 = sand.u32 %s28, 1
          %s209 = scalar_lea.sflag [#allocation3], %s208
          %s210 = sand.u32 %s28, 1
          %s211 = smul.addr %s210, 16
          %s212 = scalar_lea.vmem [#allocation2], %s211
          %s213 = smul.u32 4, %s18
          %s215 = ssub.s32 256, 256
          %216 = vsyncadd %s209, %s215
          %s217 = smul.addr %s213, 64
          %s218 = scalar_lea.hbm %s0, %s217
          %s219 = sshll.u32 %s212, 4
          %s220 = int_to_ptr.vmem [resolvable:$true] %s219
          %225 = dma.hbm_to_vmem [thread:$0]  %s218, 256, %s220, %s209, 64, 64, 4
        $region36: #{tpu_custom_call.1} parent=31 // pred_fallthru
          _
      $region32: #{tpu_custom_call.1} parent=5 // pred_fallthru
        _
      %p226 = scmp.le.s32.totalorder 1, %s18
      %p227 = scmp.lt.s32.totalorder %s18, 3
      %p228 = pnand %p226, %p227
      %p229 = pneg %p228
      // Predicated region
      $region37: #{tpu_custom_call.1} parent=5 // pred_check
        _
      $region38: #{tpu_custom_call.1} parent=5 // pred_check_branch
        %231 = sbr.rel (%p228) target = $region40
      $region39: #{tpu_custom_call.1} parent=5 // pred_region
        %s232 = ssub.s32 %s18, 1
        %s233 = sand.u32 %s31, 1
        %s234 = scalar_lea.sflag [#allocation3], %s233
        %s235 = sand.u32 %s31, 1
        %s236 = smul.addr %s235, 16
        %s237 = scalar_lea.vmem [#allocation2], %s236
        // Predicated region
        $region41: #{tpu_custom_call.1} parent=39 // pred_check
          %p238 = pneg %p44
        $region42: #{tpu_custom_call.1} parent=39 // pred_check_branch
          %240 = sbr.rel (%p238) target = $region44
        $region43: #{tpu_custom_call.1} parent=39 // pred_region
          %241 = dma.done %s234, 256
        $region44: #{tpu_custom_call.1} parent=39 // pred_fallthru
          _
        // Predicated region
        $region45: #{tpu_custom_call.1} parent=39 // pred_check
          %p242 = pneg %p65
        $region46: #{tpu_custom_call.1} parent=39 // pred_check_branch
          %244 = sbr.rel (%p242) target = $region48
        $region47: #{tpu_custom_call.1} parent=39 // pred_region
          %245 = dma.done [#allocation6], 1024
        $region48: #{tpu_custom_call.1} parent=39 // pred_fallthru
          _
        // Predicated region
        $region49: #{tpu_custom_call.1} parent=39 // pred_check
          %p246 = pneg %p86
        $region50: #{tpu_custom_call.1} parent=39 // pred_check_branch
          %248 = sbr.rel (%p246) target = $region52
        $region51: #{tpu_custom_call.1} parent=39 // pred_region
          %249 = dma.done [#allocation6], 3072
        $region52: #{tpu_custom_call.1} parent=39 // pred_fallthru
          _
        %s250 = sand.u32 %s31, 1
        %s251 = scalar_lea.sflag [#allocation3], %s250
        %s252 = sand.u32 %s31, 1
        %s253 = smul.addr %s252, 16
        %s254 = scalar_lea.vmem [#allocation2], %s253
        %p255 = pneg %p44
        %p256 = pneg %p41
        %p257 = pneg %p65
        %p258 = pneg %p62
        %p259 = pneg %p86
        %p260 = pneg %p83
        %p261 = pneg %p107
        %p262 = pneg %p104
        %p263 = pneg %p128
        %p264 = pneg %p125
        %p265 = pneg %p154
        %p266 = pneg %p151
        %s267 = sand.u32 %s141, 1
        %s268 = scalar_lea.sflag [#allocation4], %s267
        %s269 = sand.u32 %s141, 1
        %s270 = smul.addr %s269, 16
        %s271 = scalar_lea.vmem [#allocation8], %s270
        %s272 = smul.u32 4, %s23
        %s273 = smul.u32 4, %s23
        %v275 = vld [vmem:[%s237] sm:$0xf]
        %v276 = vld [vmem:[%s237 + $0x4] sm:$0xf]
        %v277 = vld [vmem:[%s237 + $0x8] sm:$0xf]
        %v278 = vld [vmem:[%s237 + $0xc] sm:$0xf]
        %v279 = vld [vmem:[#allocation5] sm:$0xf]
        %v280 = vld [vmem:[#allocation5 + $0x4] sm:$0xf]
        %v281 = vld [vmem:[#allocation5 + $0x8] sm:$0xf]
        %v282 = vld [vmem:[#allocation5 + $0xc] sm:$0xf]
        %v283 = vld [vmem:[#allocation5 + $0x10] sm:$0xf]
        %v284 = vld [vmem:[#allocation5 + $0x14] sm:$0xf]
        %v285 = vld [vmem:[#allocation5 + $0x18] sm:$0xf]
        %v286 = vld [vmem:[#allocation5 + $0x1c] sm:$0xf]
        %v287 = vld [vmem:[#allocation5 + $0x20] sm:$0xf]
        %v288 = vld [vmem:[#allocation5 + $0x24] sm:$0xf]
        %v289 = vld [vmem:[#allocation5 + $0x28] sm:$0xf]
        %v290 = vld [vmem:[#allocation5 + $0x2c] sm:$0xf]
        %v291 = vld [vmem:[#allocation5 + $0x30] sm:$0xf]
        %v292 = vld [vmem:[#allocation5 + $0x34] sm:$0xf]
        %v293 = vld [vmem:[#allocation5 + $0x38] sm:$0xf]
        %v294 = vld [vmem:[#allocation5 + $0x3c] sm:$0xf]
        %v299 = vunpack.c.l.b16 %v275
        %v300 = vunpack.c.l.b16 %v276
        %v301 = vunpack.c.l.b16 %v277
        %v302 = vunpack.c.l.b16 %v278
        %v303 = vpack.c.b16 %v300, %v299
        %v304 = vpack.c.b16 %v302, %v301
        %v323 = vunpack.c.l.b16 %v279
        %v324 = vunpack.c.l.b16 %v280
        %v325 = vunpack.c.l.b16 %v281
        %v326 = vunpack.c.l.b16 %v282
        %v327 = vunpack.c.l.b16 %v283
        %v328 = vunpack.c.l.b16 %v284
        %v329 = vunpack.c.l.b16 %v285
        %v330 = vunpack.c.l.b16 %v286
        %v331 = vunpack.c.l.b16 %v287
        %v332 = vunpack.c.l.b16 %v288
        %v333 = vunpack.c.l.b16 %v289
        %v334 = vunpack.c.l.b16 %v290
        %v335 = vunpack.c.l.b16 %v291
        %v336 = vunpack.c.l.b16 %v292
        %v337 = vunpack.c.l.b16 %v293
        %v338 = vunpack.c.l.b16 %v294
        %v339 = vpack.c.b16 %v324, %v323
        %v340 = vpack.c.b16 %v326, %v325
        %v341 = vpack.c.b16 %v328, %v327
        %v342 = vpack.c.b16 %v330, %v329
        %v343 = vpack.c.b16 %v332, %v331
        %v344 = vpack.c.b16 %v334, %v333
        %v345 = vpack.c.b16 %v336, %v335
        %v346 = vpack.c.b16 %v338, %v337
        %355 = vmatprep.subr.bf16.mxu0 0
        %356 = vmatpush1.bf16.msra.mxu0 %v346
        %357 = vmatprep.subr.bf16.mxu0 0
        %358 = vmatpush1.bf16.msra.mxu0 %v345
        %359 = vmatprep.subr.bf16.mxu0 0
        %360 = vmatpush1.bf16.msra.mxu0 %v344
        %361 = vmatprep.subr.bf16.mxu0 0
        %362 = vmatpush1.bf16.msra.mxu0 %v343
        %363 = vmatprep.subr.bf16.mxu0 0
        %364 = vmatpush1.bf16.msra.mxu0 %v342
        %365 = vmatprep.subr.bf16.mxu0 0
        %366 = vmatpush1.bf16.msra.mxu0 %v341
        %367 = vmatprep.subr.bf16.mxu0 0
        %368 = vmatpush1.bf16.msra.mxu0 %v340
        %369 = vmatprep.subr.bf16.mxu0 0
        %370 = vmatpush1.bf16.msra.mxu0 %v339
        %371 = vmatprep.subr.bf16.mxu0 0
        %372 = vmatpush2.bf16.msra.mxu0 0
        %373 = vmatprep.subr.bf16.mxu0 0
        %374 = vmatpush2.bf16.msra.mxu0 0
        %375 = vmatprep.subr.bf16.mxu0 0
        %376 = vmatpush2.bf16.msra.mxu0 0
        %377 = vmatprep.subr.bf16.mxu0 0
        %378 = vmatpush2.bf16.msra.mxu0 0
        %379 = vmatprep.subr.bf16.mxu0 0
        %380 = vmatpush2.bf16.msra.mxu0 0
        %381 = vmatprep.subr.bf16.mxu0 0
        %382 = vmatpush2.bf16.msra.mxu0 0
        %383 = vmatprep.subr.bf16.mxu0 0
        %384 = vmatpush2.bf16.msra.mxu0 0
        %385 = vmatprep.subr.bf16.mxu0 0
        %386 = vmatpush2.bf16.msra.mxu0 0
        %387 = vmatprep.mubr.bf16.mxu0 0
        %388 = vmatmul.mubr.bf16.gmra.mxu0 %v303
        %v389 = vpop.f32.mrf.mxu0
        %v390 = vadd.f32 0.0, %v389
        %v391 = vpop.f32.mrf.mxu0
        %v392 = vpop.f32.mrf.mxu0
        %v393 = vadd.f32 0.0, %v392
        %v394 = vpop.f32.mrf.mxu0
        %395 = vmatprep.mubr.bf16.mxu0 0
        %396 = vmatmul.mubr.bf16.gmra.mxu0 %v304
        %v397 = vpop.f32.mrf.mxu0
        %v398 = vadd.f32 0.0, %v397
        %v399 = vpop.f32.mrf.mxu0
        %v400 = vpop.f32.mrf.mxu0
        %v401 = vadd.f32 0.0, %v400
        %v402 = vpop.f32.mrf.mxu0
        %403 = vdwg.mxu0
        %v404 = vpack.c.bf16 %v393, %v390
        %v405 = vpack.c.bf16 %v401, %v398
        %v406 = vld [vmem:[%s3] sm:$0x1]
        %v408 = vpack.i.b16 %v406, %v406
        %v410 = vlaneseq
        %v411 = vshrl.u32 %v410, 7
        %v412 = vsub.s32 0, %v411
        %v413 = vrot.slane %v408, %v412
        %v414 = vadd.bf16 %v404, %v413
        %v415 = vadd.bf16 %v405, %v413
        %v416 = vtanh.bf16.pop %v414
        %v417 = vtanh.bf16.pop %v415
        %v418 = vld [vmem:[#allocation7] sm:$0xf]
        %v419 = vld [vmem:[#allocation7 + $0xc] sm:$0xf]
        %v420 = vld [vmem:[#allocation7 + $0x18] sm:$0xf]
        %v421 = vld [vmem:[#allocation7 + $0x24] sm:$0xf]
        %v422 = vld [vmem:[#allocation7 + $0x30] sm:$0xf]
        %v423 = vld [vmem:[#allocation7 + $0x3c] sm:$0xf]
        %v424 = vld [vmem:[#allocation7 + $0x48] sm:$0xf]
        %v425 = vld [vmem:[#allocation7 + $0x54] sm:$0xf]
        %v426 = vld [vmem:[#allocation7 + $0x60] sm:$0xf]
        %v427 = vld [vmem:[#allocation7 + $0x6c] sm:$0xf]
        %v428 = vld [vmem:[#allocation7 + $0x78] sm:$0xf]
        %v429 = vld [vmem:[#allocation7 + $0x84] sm:$0xf]
        %v430 = vld [vmem:[#allocation7 + $0x90] sm:$0xf]
        %v431 = vld [vmem:[#allocation7 + $0x9c] sm:$0xf]
        %v432 = vld [vmem:[#allocation7 + $0xa8] sm:$0xf]
        %v433 = vld [vmem:[#allocation7 + $0xb4] sm:$0xf]
        %v450 = vunpack.c.l.b16 %v418
        %v451 = vunpack.c.l.b16 %v419
        %v452 = vunpack.c.l.b16 %v420
        %v453 = vunpack.c.l.b16 %v421
        %v454 = vunpack.c.l.b16 %v422
        %v455 = vunpack.c.l.b16 %v423
        %v456 = vunpack.c.l.b16 %v424
        %v457 = vunpack.c.l.b16 %v425
        %v458 = vunpack.c.l.b16 %v426
        %v459 = vunpack.c.l.b16 %v427
        %v460 = vunpack.c.l.b16 %v428
        %v461 = vunpack.c.l.b16 %v429
        %v462 = vunpack.c.l.b16 %v430
        %v463 = vunpack.c.l.b16 %v431
        %v464 = vunpack.c.l.b16 %v432
        %v465 = vunpack.c.l.b16 %v433
        %v466 = vpack.c.b16 %v451, %v450
        %v467 = vpack.c.b16 %v453, %v452
        %v468 = vpack.c.b16 %v455, %v454
        %v469 = vpack.c.b16 %v457, %v456
        %v470 = vpack.c.b16 %v459, %v458
        %v471 = vpack.c.b16 %v461, %v460
        %v472 = vpack.c.b16 %v463, %v462
        %v473 = vpack.c.b16 %v465, %v464
        %482 = vmatprep.subr.bf16.mxu0 0
        %483 = vmatpush1.bf16.msra.mxu0 %v473
        %484 = vmatprep.subr.bf16.mxu0 0
        %485 = vmatpush1.bf16.msra.mxu0 %v472
        %486 = vmatprep.subr.bf16.mxu0 0
        %487 = vmatpush1.bf16.msra.mxu0 %v471
        %488 = vmatprep.subr.bf16.mxu0 0
        %489 = vmatpush1.bf16.msra.mxu0 %v470
        %490 = vmatprep.subr.bf16.mxu0 0
        %491 = vmatpush1.bf16.msra.mxu0 %v469
        %492 = vmatprep.subr.bf16.mxu0 0
        %493 = vmatpush1.bf16.msra.mxu0 %v468
        %494 = vmatprep.subr.bf16.mxu0 0
        %495 = vmatpush1.bf16.msra.mxu0 %v467
        %496 = vmatprep.subr.bf16.mxu0 0
        %497 = vmatpush1.bf16.msra.mxu0 %v466
        %498 = vmatprep.subr.bf16.mxu0 0
        %499 = vmatpush2.bf16.msra.mxu0 0
        %500 = vmatprep.subr.bf16.mxu0 0
        %501 = vmatpush2.bf16.msra.mxu0 0
        %502 = vmatprep.subr.bf16.mxu0 0
        %503 = vmatpush2.bf16.msra.mxu0 0
        %504 = vmatprep.subr.bf16.mxu0 0
        %505 = vmatpush2.bf16.msra.mxu0 0
        %506 = vmatprep.subr.bf16.mxu0 0
        %507 = vmatpush2.bf16.msra.mxu0 0
        %508 = vmatprep.subr.bf16.mxu0 0
        %509 = vmatpush2.bf16.msra.mxu0 0
        %510 = vmatprep.subr.bf16.mxu0 0
        %511 = vmatpush2.bf16.msra.mxu0 0
        %512 = vmatprep.subr.bf16.mxu0 0
        %513 = vmatpush2.bf16.msra.mxu0 0
        %514 = vmatprep.mubr.bf16.mxu0 0
        %515 = vmatmul.mubr.bf16.gmra.mxu0 %v416
        %v516 = vpop.f32.mrf.mxu0
        %v517 = vadd.f32 0.0, %v516
        %v518 = vpop.f32.mrf.mxu0
        %v519 = vpop.f32.mrf.mxu0
        %v520 = vadd.f32 0.0, %v519
        %v521 = vpop.f32.mrf.mxu0
        %522 = vmatprep.mubr.bf16.mxu0 0
        %523 = vmatmul.mubr.bf16.gmra.mxu0 %v417
        %v524 = vpop.f32.mrf.mxu0
        %v525 = vadd.f32 0.0, %v524
        %v526 = vpop.f32.mrf.mxu0
        %v527 = vpop.f32.mrf.mxu0
        %v528 = vadd.f32 0.0, %v527
        %v529 = vpop.f32.mrf.mxu0
        %530 = vdwg.mxu0
        %v531 = vpack.c.bf16 %v520, %v517
        %v532 = vpack.c.bf16 %v528, %v525
        %v533 = vld [vmem:[%s3 + $0x1] sm:$0x1]
        %v535 = vpack.i.b16 %v533, %v533
        %v537 = vlaneseq
        %v538 = vshrl.u32 %v537, 7
        %v539 = vsub.s32 0, %v538
        %v540 = vrot.slane %v535, %v539
        %v541 = vadd.bf16 %v531, %v540
        %v542 = vadd.bf16 %v532, %v540
        %v543 = vtanh.bf16.pop %v541
        %v544 = vtanh.bf16.pop %v542
        %v545 = vld [vmem:[#allocation7 + $0x4] sm:$0xf]
        %v546 = vld [vmem:[#allocation7 + $0x10] sm:$0xf]
        %v547 = vld [vmem:[#allocation7 + $0x1c] sm:$0xf]
        %v548 = vld [vmem:[#allocation7 + $0x28] sm:$0xf]
        %v549 = vld [vmem:[#allocation7 + $0x34] sm:$0xf]
        %v550 = vld [vmem:[#allocation7 + $0x40] sm:$0xf]
        %v551 = vld [vmem:[#allocation7 + $0x4c] sm:$0xf]
        %v552 = vld [vmem:[#allocation7 + $0x58] sm:$0xf]
        %v553 = vld [vmem:[#allocation7 + $0x64] sm:$0xf]
        %v554 = vld [vmem:[#allocation7 + $0x70] sm:$0xf]
        %v555 = vld [vmem:[#allocation7 + $0x7c] sm:$0xf]
        %v556 = vld [vmem:[#allocation7 + $0x88] sm:$0xf]
        %v557 = vld [vmem:[#allocation7 + $0x94] sm:$0xf]
        %v558 = vld [vmem:[#allocation7 + $0xa0] sm:$0xf]
        %v559 = vld [vmem:[#allocation7 + $0xac] sm:$0xf]
        %v560 = vld [vmem:[#allocation7 + $0xb8] sm:$0xf]
        %v577 = vunpack.c.l.b16 %v545
        %v578 = vunpack.c.l.b16 %v546
        %v579 = vunpack.c.l.b16 %v547
        %v580 = vunpack.c.l.b16 %v548
        %v581 = vunpack.c.l.b16 %v549
        %v582 = vunpack.c.l.b16 %v550
        %v583 = vunpack.c.l.b16 %v551
        %v584 = vunpack.c.l.b16 %v552
        %v585 = vunpack.c.l.b16 %v553
        %v586 = vunpack.c.l.b16 %v554
        %v587 = vunpack.c.l.b16 %v555
        %v588 = vunpack.c.l.b16 %v556
        %v589 = vunpack.c.l.b16 %v557
        %v590 = vunpack.c.l.b16 %v558
        %v591 = vunpack.c.l.b16 %v559
        %v592 = vunpack.c.l.b16 %v560
        %v593 = vpack.c.b16 %v578, %v577
        %v594 = vpack.c.b16 %v580, %v579
        %v595 = vpack.c.b16 %v582, %v581
        %v596 = vpack.c.b16 %v584, %v583
        %v597 = vpack.c.b16 %v586, %v585
        %v598 = vpack.c.b16 %v588, %v587
        %v599 = vpack.c.b16 %v590, %v589
        %v600 = vpack.c.b16 %v592, %v591
        %609 = vmatprep.subr.bf16.mxu0 0
        %610 = vmatpush1.bf16.msra.mxu0 %v600
        %611 = vmatprep.subr.bf16.mxu0 0
        %612 = vmatpush1.bf16.msra.mxu0 %v599
        %613 = vmatprep.subr.bf16.mxu0 0
        %614 = vmatpush1.bf16.msra.mxu0 %v598
        %615 = vmatprep.subr.bf16.mxu0 0
        %616 = vmatpush1.bf16.msra.mxu0 %v597
        %617 = vmatprep.subr.bf16.mxu0 0
        %618 = vmatpush1.bf16.msra.mxu0 %v596
        %619 = vmatprep.subr.bf16.mxu0 0
        %620 = vmatpush1.bf16.msra.mxu0 %v595
        %621 = vmatprep.subr.bf16.mxu0 0
        %622 = vmatpush1.bf16.msra.mxu0 %v594
        %623 = vmatprep.subr.bf16.mxu0 0
        %624 = vmatpush1.bf16.msra.mxu0 %v593
        %625 = vmatprep.subr.bf16.mxu0 0
        %626 = vmatpush2.bf16.msra.mxu0 0
        %627 = vmatprep.subr.bf16.mxu0 0
        %628 = vmatpush2.bf16.msra.mxu0 0
        %629 = vmatprep.subr.bf16.mxu0 0
        %630 = vmatpush2.bf16.msra.mxu0 0
        %631 = vmatprep.subr.bf16.mxu0 0
        %632 = vmatpush2.bf16.msra.mxu0 0
        %633 = vmatprep.subr.bf16.mxu0 0
        %634 = vmatpush2.bf16.msra.mxu0 0
        %635 = vmatprep.subr.bf16.mxu0 0
        %636 = vmatpush2.bf16.msra.mxu0 0
        %637 = vmatprep.subr.bf16.mxu0 0
        %638 = vmatpush2.bf16.msra.mxu0 0
        %639 = vmatprep.subr.bf16.mxu0 0
        %640 = vmatpush2.bf16.msra.mxu0 0
        %641 = vmatprep.mubr.bf16.mxu0 0
        %642 = vmatmul.mubr.bf16.gmra.mxu0 %v543
        %v643 = vpop.f32.mrf.mxu0
        %v644 = vadd.f32 0.0, %v643
        %v645 = vpop.f32.mrf.mxu0
        %v646 = vpop.f32.mrf.mxu0
        %v647 = vadd.f32 0.0, %v646
        %v648 = vpop.f32.mrf.mxu0
        %649 = vmatprep.mubr.bf16.mxu0 0
        %650 = vmatmul.mubr.bf16.gmra.mxu0 %v544
        %v651 = vpop.f32.mrf.mxu0
        %v652 = vadd.f32 0.0, %v651
        %v653 = vpop.f32.mrf.mxu0
        %v654 = vpop.f32.mrf.mxu0
        %v655 = vadd.f32 0.0, %v654
        %v656 = vpop.f32.mrf.mxu0
        %657 = vdwg.mxu0
        %v658 = vpack.c.bf16 %v647, %v644
        %v659 = vpack.c.bf16 %v655, %v652
        %v660 = vld [vmem:[%s3 + $0x2] sm:$0x1]
        %v662 = vpack.i.b16 %v660, %v660
        %v664 = vlaneseq
        %v665 = vshrl.u32 %v664, 7
        %v666 = vsub.s32 0, %v665
        %v667 = vrot.slane %v662, %v666
        %v668 = vadd.bf16 %v658, %v667
        %v669 = vadd.bf16 %v659, %v667
        %v670 = vtanh.bf16.pop %v668
        %v671 = vtanh.bf16.pop %v669
        %v672 = vld [vmem:[#allocation7 + $0x8] sm:$0xf]
        %v673 = vld [vmem:[#allocation7 + $0x14] sm:$0xf]
        %v674 = vld [vmem:[#allocation7 + $0x20] sm:$0xf]
        %v675 = vld [vmem:[#allocation7 + $0x2c] sm:$0xf]
        %v676 = vld [vmem:[#allocation7 + $0x38] sm:$0xf]
        %v677 = vld [vmem:[#allocation7 + $0x44] sm:$0xf]
        %v678 = vld [vmem:[#allocation7 + $0x50] sm:$0xf]
        %v679 = vld [vmem:[#allocation7 + $0x5c] sm:$0xf]
        %v680 = vld [vmem:[#allocation7 + $0x68] sm:$0xf]
        %v681 = vld [vmem:[#allocation7 + $0x74] sm:$0xf]
        %v682 = vld [vmem:[#allocation7 + $0x80] sm:$0xf]
        %v683 = vld [vmem:[#allocation7 + $0x8c] sm:$0xf]
        %v684 = vld [vmem:[#allocation7 + $0x98] sm:$0xf]
        %v685 = vld [vmem:[#allocation7 + $0xa4] sm:$0xf]
        %v686 = vld [vmem:[#allocation7 + $0xb0] sm:$0xf]
        %v687 = vld [vmem:[#allocation7 + $0xbc] sm:$0xf]
        %v688 = vld [vmem:[%s4] sm:$0x1]
        %v690 = vlaneseq
        %v691 = vshrl.u32 %v690, 7
        %v692 = vsub.s32 0, %v691
        %v693 = vrot.slane %v688, %v692
        %v711 = vunpack.c.l.b16 %v672
        %v712 = vunpack.c.l.b16 %v673
        %v713 = vunpack.c.l.b16 %v674
        %v714 = vunpack.c.l.b16 %v675
        %v715 = vunpack.c.l.b16 %v676
        %v716 = vunpack.c.l.b16 %v677
        %v717 = vunpack.c.l.b16 %v678
        %v718 = vunpack.c.l.b16 %v679
        %v719 = vunpack.c.l.b16 %v680
        %v720 = vunpack.c.l.b16 %v681
        %v721 = vunpack.c.l.b16 %v682
        %v722 = vunpack.c.l.b16 %v683
        %v723 = vunpack.c.l.b16 %v684
        %v724 = vunpack.c.l.b16 %v685
        %v725 = vunpack.c.l.b16 %v686
        %v726 = vunpack.c.l.b16 %v687
        %v727 = vpack.c.b16 %v712, %v711
        %v728 = vpack.c.b16 %v714, %v713
        %v729 = vpack.c.b16 %v716, %v715
        %v730 = vpack.c.b16 %v718, %v717
        %v731 = vpack.c.b16 %v720, %v719
        %v732 = vpack.c.b16 %v722, %v721
        %v733 = vpack.c.b16 %v724, %v723
        %v734 = vpack.c.b16 %v726, %v725
        %743 = vmatprep.subr.bf16.mxu0 0
        %744 = vmatpush1.bf16.msra.mxu0 %v734
        %745 = vmatprep.subr.bf16.mxu0 0
        %746 = vmatpush1.bf16.msra.mxu0 %v733
        %747 = vmatprep.subr.bf16.mxu0 0
        %748 = vmatpush1.bf16.msra.mxu0 %v732
        %749 = vmatprep.subr.bf16.mxu0 0
        %750 = vmatpush1.bf16.msra.mxu0 %v731
        %751 = vmatprep.subr.bf16.mxu0 0
        %752 = vmatpush1.bf16.msra.mxu0 %v730
        %753 = vmatprep.subr.bf16.mxu0 0
        %754 = vmatpush1.bf16.msra.mxu0 %v729
        %755 = vmatprep.subr.bf16.mxu0 0
        %756 = vmatpush1.bf16.msra.mxu0 %v728
        %757 = vmatprep.subr.bf16.mxu0 0
        %758 = vmatpush1.bf16.msra.mxu0 %v727
        %759 = vmatprep.subr.bf16.mxu0 0
        %760 = vmatpush2.bf16.msra.mxu0 0
        %761 = vmatprep.subr.bf16.mxu0 0
        %762 = vmatpush2.bf16.msra.mxu0 0
        %763 = vmatprep.subr.bf16.mxu0 0
        %764 = vmatpush2.bf16.msra.mxu0 0
        %765 = vmatprep.subr.bf16.mxu0 0
        %766 = vmatpush2.bf16.msra.mxu0 0
        %767 = vmatprep.subr.bf16.mxu0 0
        %768 = vmatpush2.bf16.msra.mxu0 0
        %769 = vmatprep.subr.bf16.mxu0 0
        %770 = vmatpush2.bf16.msra.mxu0 0
        %771 = vmatprep.subr.bf16.mxu0 0
        %772 = vmatpush2.bf16.msra.mxu0 0
        %773 = vmatprep.subr.bf16.mxu0 0
        %774 = vmatpush2.bf16.msra.mxu0 0
        %775 = vmatprep.mubr.bf16.mxu0 0
        %776 = vmatmul.mubr.bf16.gmra.mxu0 %v670
        %v777 = vpop.f32.mrf.mxu0
        %v778 = vadd.f32 %v693, %v777
        %v779 = vpop.f32.mrf.mxu0
        %v780 = vpop.f32.mrf.mxu0
        %v781 = vadd.f32 %v693, %v780
        %v782 = vpop.f32.mrf.mxu0
        %783 = vmatprep.mubr.bf16.mxu0 0
        %784 = vmatmul.mubr.bf16.gmra.mxu0 %v671
        %v785 = vpop.f32.mrf.mxu0
        %v786 = vadd.f32 %v693, %v785
        %v787 = vpop.f32.mrf.mxu0
        %v788 = vpop.f32.mrf.mxu0
        %v789 = vadd.f32 %v693, %v788
        %v790 = vpop.f32.mrf.mxu0
        %791 = vdwg.mxu0
        %v792 = vpack.c.bf16 %v781, %v778
        %v793 = vpack.c.bf16 %v789, %v786
        %v796 = vunpack.c.l.b16 %v792
        %v797 = vunpack.c.h.b16 %v792
        %v798 = vunpack.c.l.b16 %v793
        %v799 = vunpack.c.h.b16 %v793
        %v800 = vpack.c.b16 %v796, %v796
        %v801 = vpack.c.b16 %v797, %v797
        %v802 = vpack.c.b16 %v798, %v798
        %v803 = vpack.c.b16 %v799, %v799
        %808 = vst [vmem:[%s271] sm:$0xf] %v800
        %809 = vst [vmem:[%s271 + $0x4] sm:$0xf] %v801
        %810 = vst [vmem:[%s271 + $0x8] sm:$0xf] %v802
        %811 = vst [vmem:[%s271 + $0xc] sm:$0xf] %v803
        %s812 = sand.u32 %s141, 1
        %s813 = scalar_lea.sflag [#allocation4], %s812
        %s814 = sand.u32 %s141, 1
        %s815 = smul.addr %s814, 16
        %s816 = scalar_lea.vmem [#allocation8], %s815
        // Predicated region
        $region53: #{tpu_custom_call.1} parent=39 // pred_check
          %p817 = pneg %p151
        $region54: #{tpu_custom_call.1} parent=39 // pred_check_branch
          %819 = sbr.rel (%p817) target = $region56
        $region55: #{tpu_custom_call.1} parent=39 // pred_region
          %s820 = smul.u32 4, %s23
          %s822 = ssub.s32 256, 256
          %823 = vsyncadd %s813, %s822
          %s824 = smul.addr %s820, 64
          %s825 = scalar_lea.hbm %s5, %s824
          %s826 = sshll.u32 %s816, 4
          %s827 = int_to_ptr.vmem [resolvable:$true] %s826
          %832 = dma.vmem_to_hbm [thread:$0]  %s827, 256, %s825, %s813, 64, 64, 4
        $region56: #{tpu_custom_call.1} parent=39 // pred_fallthru
          _
      $region40: #{tpu_custom_call.1} parent=5 // pred_fallthru
        _
      %p833 = scmp.le.s32.totalorder 2, %s18
      // Predicated region
      $region57: #{tpu_custom_call.1} parent=5 // pred_check
        %p834 = pneg %p833
      $region58: #{tpu_custom_call.1} parent=5 // pred_check_branch
        %836 = sbr.rel (%p834) target = $region60
      $region59: #{tpu_custom_call.1} parent=5 // pred_region
        %s837 = ssub.s32 %s18, 2
        // Predicated region
        $region61: #{tpu_custom_call.1} parent=59 // pred_check
          %p838 = pneg %p157
        $region62: #{tpu_custom_call.1} parent=59 // pred_check_branch
          %840 = sbr.rel (%p838) target = $region64
        $region63: #{tpu_custom_call.1} parent=59 // pred_region
          %s841 = sand.u32 %s142, 1
          %s842 = scalar_lea.sflag [#allocation4], %s841
          %s843 = sand.u32 %s142, 1
          %s844 = smul.addr %s843, 16
          %s845 = scalar_lea.vmem [#allocation8], %s844
          %846 = dma.done %s842, 256
        $region64: #{tpu_custom_call.1} parent=59 // pred_fallthru
          _
      $region60: #{tpu_custom_call.1} parent=5 // pred_fallthru
        _
    $region6: #{tpu_custom_call.1} parent=1 // loop_footer
      %s22 = sadd.s32 1, %s18
    $region7: #{tpu_custom_call.1} parent=1 // loop_footer_branch
      %17 = sbr.rel target = $region3
    $region8: #{tpu_custom_call.1} parent=1 // loop_exit
      _
    %847 = vsyncpa [#allocation3], 1
    %s848 = scalar_lea.sflag [#allocation3], 1
    %849 = vsyncpa %s848, 1
    %850 = vsyncpa [#allocation6], 1
    %851 = vsyncpa [#allocation4], 1
    %s852 = scalar_lea.sflag [#allocation4], 1
    %853 = vsyncpa %s852, 1

</llo_original>
